<compile_context>
chip_gen: v5e
topology: v5e:2x2
jax: 0.10.0
libtpu: 0.0.40
codegen_flags: <defaults>
</compile_context>

<pallas_src>
import math
import re

import jax
import jax.numpy as jnp
from jax.experimental import pallas as pl
from jax.experimental.pallas import tpu as pltpu

_TWO_PI = 2.0 * math.pi


def _temporal_kernel(years_ref, months_ref, days_ref, out_ref):
    odt = out_ref.dtype

    # Year feature first (cheap), then month sin/cos stored before the day
    # angle is even computed -> shorter live ranges across the sin/cos
    # polynomial expansion (less vreg pressure at large tiles).
    years = years_ref[...].astype(jnp.float32)
    out_ref[0] = ((years - 1985.0) / 55.0).astype(odt)

    months = months_ref[...].astype(jnp.float32)
    month_rad = (_TWO_PI * (months - 1.0)) / 12.0
    out_ref[1] = jnp.sin(month_rad).astype(odt)
    out_ref[2] = jnp.cos(month_rad).astype(odt)

    days = days_ref[...].astype(jnp.float32)
    day_rad = (_TWO_PI * (days - 1.0)) / 31.0
    out_ref[3] = jnp.sin(day_rad).astype(odt)
    out_ref[4] = jnp.cos(day_rad).astype(odt)


def _tpu_generation():
    """Best-effort TPU generation number (5, 6, 7, ...); 0 if unknown."""
    try:
        kind = jax.devices()[0].device_kind.lower()
    except Exception:  # pragma: no cover - defensive
        return 0
    m = re.search(r"v(\d+)", kind)
    return int(m.group(1)) if m else 0


def _pick_block(full_dim, cap, align):
    """Full-extent block if it fits under `cap`, else an `align`-multiple tile."""
    if full_dim <= cap:
        return full_dim  # full array dim: always legal regardless of (8,128)
    tile = max(align, (cap // align) * align)
    return full_dim if tile >= full_dim else tile


def temporal_encoder(years, months, days, *, block_b=None, block_t=None,
                     out_dtype=jnp.float32, feature_major=False,
                     vmem_limit_bytes=None):
    """Pallas implementation of TemporalEncoder.forward.

    years/months/days: (B, T) arrays. Pass them in their native dtype
    (int16 recommended) -- the cast to f32 happens inside the kernel.
    Returns (B, T, 5) by default (matches torch.stack(..., dim=-1)), or the
    lane-dense (5, B, T) layout if feature_major=True (recommended fast path).
    """
    years = jnp.asarray(years)
    months = jnp.asarray(months)
    days = jnp.asarray(days)
    assert years.shape == months.shape == days.shape and years.ndim == 2
    B, T = years.shape

    gen = _tpu_generation()

    # Per-generation tile defaults (purely memory-bound kernel):
    #   v6e/v7x: (128, 2048) per step, explicit vmem_limit_bytes for headroom.
    #   v5e/unknown: (128, 1024) -> ~8 MiB double-buffered, fits 16 MiB scoped.
    if block_b is None:
        block_b = 128
    if block_t is None:
        block_t = 2048 if gen >= 6 else 1024
    if vmem_limit_bytes is None and gen >= 6:
        vmem_limit_bytes = 40 << 20

    # Sublane (second-to-last dim) alignment is 32B / itemsize of the
    # narrowest operand touching that block (inputs + output).
    itemsizes = [jnp.dtype(a.dtype).itemsize for a in (years, months, days)]
    itemsizes.append(jnp.dtype(out_dtype).itemsize)
    align_b = max(8, 32 // min(itemsizes))

    tb = _pick_block(B, block_b, align_b)
    tt = _pick_block(T, block_t, 128)

    # v7x has 2 TensorCores: make sure there are >= 2 grid steps to shard
    # across when the shape allows it, otherwise the second TC idles.
    if gen >= 7 and pl.cdiv(B, tb) * pl.cdiv(T, tt) < 2:
        half_t = ((T // 2) // 128) * 128
        half_b = ((B // 2) // align_b) * align_b
        if half_t >= 128:
            tt = half_t
        elif half_b >= align_b:
            tb = half_b

    grid = (pl.cdiv(B, tb), pl.cdiv(T, tt))

    in_spec = pl.BlockSpec((tb, tt), lambda i, j: (i, j))
    # Feature-MAJOR output block: last dim is the T tile (multiple of 128 or
    # the full extent) -> every store is lane-dense, no masked vst.
    out_spec = pl.BlockSpec((5, tb, tt), lambda i, j: (0, i, j))

    in_bytes = sum(B * T * s for s in itemsizes[:3])
    out_bytes = 5 * B * T * jnp.dtype(out_dtype).itemsize
    cost = pl.CostEstimate(
        flops=10 * B * T,
        transcendentals=4 * B * T,
        bytes_accessed=in_bytes + out_bytes,
    )

    out_5bt = pl.pallas_call(
        _temporal_kernel,
        out_shape=jax.ShapeDtypeStruct((5, B, T), out_dtype),
        grid=grid,
        in_specs=[in_spec, in_spec, in_spec],
        out_specs=out_spec,
        compiler_params=pltpu.CompilerParams(
            dimension_semantics=("parallel", "parallel"),
            vmem_limit_bytes=vmem_limit_bytes),
        cost_estimate=cost,
    )(years, months, days)

    if feature_major:
        return out_5bt
    # Glue for exact torch parity (torch.stack(..., dim=-1) layout).  Kept
    # outside the kernel: a last-dim-5 output block would pad VMEM 128/5-fold
    # and give 5/128 lane utilization.  Prefer feature_major=True (or fuse the
    # downstream projection) to skip this extra HBM pass.
    return jnp.moveaxis(out_5bt, 0, -1)


def _reference(years, months, days):
    years = jnp.asarray(years, jnp.float32)
    months = jnp.asarray(months, jnp.float32)
    days = jnp.asarray(days, jnp.float32)
    year_norm = (years - 1985.0) / 55.0
    month_rad = 2.0 * math.pi * (months - 1.0) / 12.0
    day_rad = 2.0 * math.pi * (days - 1.0) / 31.0
    return jnp.stack(
        [year_norm, jnp.sin(month_rad), jnp.cos(month_rad),
         jnp.sin(day_rad), jnp.cos(day_rad)],
        axis=-1,
    )


def _make_inputs(key, B, T, dtype):
    k_y, k_m, k_d = jax.random.split(key, 3)
    years = jax.random.randint(k_y, (B, T), 1985, 2041).astype(dtype)
    months = jax.random.randint(k_m, (B, T), 1, 13).astype(dtype)
    days = jax.random.randint(k_d, (B, T), 1, 32).astype(dtype)
    return years, months, days


if __name__ == "__main__":
    # Case 1: tiny shape (batch=2, seq=8), int16 inputs (cast happens in the
    # kernel), single full-extent block, torch-matching (B, T, 5) output.
    y, m, d = _make_inputs(jax.random.PRNGKey(0), 2, 8, jnp.int16)
    out = jax.block_until_ready(temporal_encoder(y, m, d))
    assert out.shape == (2, 8, 5), out.shape
    assert out.dtype == jnp.float32
    assert jnp.allclose(out, _reference(y, m, d), atol=1e-5, rtol=1e-5)

    # Case 2: tiled grid path with ragged edge tiles (B=10, T=200, 8x128
    # blocks -> grid (2, 2)), f32 inputs.
    y2, m2, d2 = _make_inputs(jax.random.PRNGKey(1), 10, 200, jnp.float32)
    out2 = jax.block_until_ready(
        temporal_encoder(y2, m2, d2, block_b=8, block_t=128))
    assert out2.shape == (10, 200, 5), out2.shape
    assert jnp.allclose(out2, _reference(y2, m2, d2), atol=1e-5, rtol=1e-5)

    # Case 3: recommended fast path -- int16 inputs, feature-major bf16
    # output, no wrapper transpose, exact tiling (grid (1, 2)).
    y3, m3, d3 = _make_inputs(jax.random.PRNGKey(2), 16, 256, jnp.int16)
    out3 = jax.block_until_ready(
        temporal_encoder(y3, m3, d3, block_b=16, block_t=128,
                         out_dtype=jnp.bfloat16, feature_major=True))
    assert out3.shape == (5, 16, 256), out3.shape
    assert out3.dtype == jnp.bfloat16
    ref3 = _reference(y3, m3, d3)
    assert jnp.allclose(jnp.moveaxis(out3.astype(jnp.float32), 0, -1), ref3,
                        atol=1e-2, rtol=1e-2)

    print("KERNEL_OK")
</pallas_src>

<mosaic_0001>
module attributes {stable_mosaic.version = 11 : i64} {
  func.func @_temporal_kernel(%arg0: i32, %arg1: i32, %arg2: memref<2x8xi16, #tpu.memory_space<vmem>>, %arg3: memref<2x8xi16, #tpu.memory_space<vmem>>, %arg4: memref<2x8xi16, #tpu.memory_space<vmem>>, %arg5: memref<5x2x8xf32, #tpu.memory_space<vmem>>) attributes {dimension_semantics = [#tpu.dimension_semantics<parallel>, #tpu.dimension_semantics<parallel>], iteration_bounds = array<i64: 1, 1>, scalar_prefetch = 0 : i64, scratch_operands = 0 : i64, tpu.core_type = #tpu.core_type<tc>, window_params = [{transform_indices = @transform_0, window_bounds = array<i64: 2, 8>}, {transform_indices = @transform_1, window_bounds = array<i64: 2, 8>}, {transform_indices = @transform_2, window_bounds = array<i64: 2, 8>}, {transform_indices = @transform_3, window_bounds = array<i64: 5, 2, 8>}]} {
    %c0 = arith.constant 0 : index
    %c0_0 = arith.constant 0 : index
    %0 = vector.load %arg2[%c0, %c0_0] : memref<2x8xi16, #tpu.memory_space<vmem>>, vector<2x8xi16>
    %1 = arith.sitofp %0 : vector<2x8xi16> to vector<2x8xf32>
    %cst = arith.constant 1.985000e+03 : f32
    %2 = vector.broadcast %cst : f32 to vector<2x8xf32>
    %3 = arith.subf %1, %2 : vector<2x8xf32>
    %cst_1 = arith.constant 5.500000e+01 : f32
    %4 = vector.broadcast %cst_1 : f32 to vector<2x8xf32>
    %5 = arith.divf %3, %4 : vector<2x8xf32>
    %c0_2 = arith.constant 0 : index
    %c0_3 = arith.constant 0 : index
    %c0_4 = arith.constant 0 : index
    %6 = vector.load %arg5[%c0_2, %c0_3, %c0_4] : memref<5x2x8xf32, #tpu.memory_space<vmem>>, vector<1x2x8xf32>
    %7 = vector.shape_cast %6 : vector<1x2x8xf32> to vector<2x8xf32>
    %8 = vector.shape_cast %5 : vector<2x8xf32> to vector<1x2x8xf32>
    tpu.vector_store %arg5[%c0_2, %c0_3, %c0_4], %8 {strides = array<i32>} : memref<5x2x8xf32, #tpu.memory_space<vmem>>, vector<1x2x8xf32>,
    %c0_5 = arith.constant 0 : index
    %c0_6 = arith.constant 0 : index
    %9 = vector.load %arg3[%c0_5, %c0_6] : memref<2x8xi16, #tpu.memory_space<vmem>>, vector<2x8xi16>
    %10 = arith.sitofp %9 : vector<2x8xi16> to vector<2x8xf32>
    %cst_7 = arith.constant 1.000000e+00 : f32
    %11 = vector.broadcast %cst_7 : f32 to vector<2x8xf32>
    %12 = arith.subf %10, %11 : vector<2x8xf32>
    %cst_8 = arith.constant 6.28318548 : f32
    %13 = vector.broadcast %cst_8 : f32 to vector<2x8xf32>
    %14 = arith.mulf %13, %12 : vector<2x8xf32>
    %cst_9 = arith.constant 1.200000e+01 : f32
    %15 = vector.broadcast %cst_9 : f32 to vector<2x8xf32>
    %16 = arith.divf %14, %15 : vector<2x8xf32>
    %17 = math.sin %16 : vector<2x8xf32>
    %c1 = arith.constant 1 : index
    %c0_10 = arith.constant 0 : index
    %c0_11 = arith.constant 0 : index
    %18 = vector.load %arg5[%c1, %c0_10, %c0_11] : memref<5x2x8xf32, #tpu.memory_space<vmem>>, vector<1x2x8xf32>
    %19 = vector.shape_cast %18 : vector<1x2x8xf32> to vector<2x8xf32>
    %20 = vector.shape_cast %17 : vector<2x8xf32> to vector<1x2x8xf32>
    tpu.vector_store %arg5[%c1, %c0_10, %c0_11], %20 {strides = array<i32>} : memref<5x2x8xf32, #tpu.memory_space<vmem>>, vector<1x2x8xf32>,
    %21 = math.cos %16 : vector<2x8xf32>
    %c2 = arith.constant 2 : index
    %c0_12 = arith.constant 0 : index
    %c0_13 = arith.constant 0 : index
    %22 = vector.load %arg5[%c2, %c0_12, %c0_13] : memref<5x2x8xf32, #tpu.memory_space<vmem>>, vector<1x2x8xf32>
    %23 = vector.shape_cast %22 : vector<1x2x8xf32> to vector<2x8xf32>
    %24 = vector.shape_cast %21 : vector<2x8xf32> to vector<1x2x8xf32>
    tpu.vector_store %arg5[%c2, %c0_12, %c0_13], %24 {strides = array<i32>} : memref<5x2x8xf32, #tpu.memory_space<vmem>>, vector<1x2x8xf32>,
    %c0_14 = arith.constant 0 : index
    %c0_15 = arith.constant 0 : index
    %25 = vector.load %arg4[%c0_14, %c0_15] : memref<2x8xi16, #tpu.memory_space<vmem>>, vector<2x8xi16>
    %26 = arith.sitofp %25 : vector<2x8xi16> to vector<2x8xf32>
    %cst_16 = arith.constant 1.000000e+00 : f32
    %27 = vector.broadcast %cst_16 : f32 to vector<2x8xf32>
    %28 = arith.subf %26, %27 : vector<2x8xf32>
    %cst_17 = arith.constant 6.28318548 : f32
    %29 = vector.broadcast %cst_17 : f32 to vector<2x8xf32>
    %30 = arith.mulf %29, %28 : vector<2x8xf32>
    %cst_18 = arith.constant 3.100000e+01 : f32
    %31 = vector.broadcast %cst_18 : f32 to vector<2x8xf32>
    %32 = arith.divf %30, %31 : vector<2x8xf32>
    %33 = math.sin %32 : vector<2x8xf32>
    %c3 = arith.constant 3 : index
    %c0_19 = arith.constant 0 : index
    %c0_20 = arith.constant 0 : index
    %34 = vector.load %arg5[%c3, %c0_19, %c0_20] : memref<5x2x8xf32, #tpu.memory_space<vmem>>, vector<1x2x8xf32>
    %35 = vector.shape_cast %34 : vector<1x2x8xf32> to vector<2x8xf32>
    %36 = vector.shape_cast %33 : vector<2x8xf32> to vector<1x2x8xf32>
    tpu.vector_store %arg5[%c3, %c0_19, %c0_20], %36 {strides = array<i32>} : memref<5x2x8xf32, #tpu.memory_space<vmem>>, vector<1x2x8xf32>,
    %37 = math.cos %32 : vector<2x8xf32>
    %c4 = arith.constant 4 : index
    %c0_21 = arith.constant 0 : index
    %c0_22 = arith.constant 0 : index
    %38 = vector.load %arg5[%c4, %c0_21, %c0_22] : memref<5x2x8xf32, #tpu.memory_space<vmem>>, vector<1x2x8xf32>
    %39 = vector.shape_cast %38 : vector<1x2x8xf32> to vector<2x8xf32>
    %40 = vector.shape_cast %37 : vector<2x8xf32> to vector<1x2x8xf32>
    tpu.vector_store %arg5[%c4, %c0_21, %c0_22], %40 {strides = array<i32>} : memref<5x2x8xf32, #tpu.memory_space<vmem>>, vector<1x2x8xf32>,
    return
  }
  func.func @transform_0(%arg0: i32, %arg1: i32) -> (i32, i32) {
    %c0_i32 = arith.constant 0 : i32
    return %arg0, %arg1 : i32, i32
  }
  func.func @transform_1(%arg0: i32, %arg1: i32) -> (i32, i32) {
    %c0_i32 = arith.constant 0 : i32
    return %arg0, %arg1 : i32, i32
  }
  func.func @transform_2(%arg0: i32, %arg1: i32) -> (i32, i32) {
    %c0_i32 = arith.constant 0 : i32
    return %arg0, %arg1 : i32, i32
  }
  func.func @transform_3(%arg0: i32, %arg1: i32) -> (i32, i32, i32) {
    %c0_i32 = arith.constant 0 : i32
    %c0_i32_0 = arith.constant 0 : i32
    return %c0_i32, %arg0, %arg1 : i32, i32, i32
  }
}

</mosaic_0001>

<llo_original>
// kernel: tpu_custom_call.1
$region0: #{tpu_custom_call.1}
  #allocation0 [shape = 'u32[]', space=smem, size = 0x4, offset = 0x4, fixed_abs, tag = 'smem constant byte address 0x4 - core index']
  #allocation1 [shape = 'u32[72,128]{1,0:T(1,128)}', space=vmem, size = 0x9000, scoped, tag = 'internal scratch']
  %s0 = inlined_call_operand.hbm [shape: s16[2,8], index: 0, kind: input, shape index: {}]
  %s1 = inlined_call_operand.hbm [shape: s16[2,8], index: 1, kind: input, shape index: {}]
  %s2 = inlined_call_operand.vmem [shape: s16[2,8], index: 2, kind: input, shape index: {}]
  %s3 = inlined_call_operand.hbm [shape: f32[5,2,8], index: 3, kind: output, shape index: {}]
  %s4 = sld [smem:[#allocation0]]
  $region30: #{tpu_custom_call.1} parent=0
    _
  %s6 = ssub.s32 1, %s4
  %s7 = scalar_select 0, %s6, %s4
  $region1: #{tpu_custom_call.1} parent=0
    #allocation2 [shape = 'u8[512]{0}', space=vmem, size = 0x400, scoped, tag = 'input window, operand 0, single buffered']
    #allocation3 [shape = 's32[1]{0}', space=sflag, size = 0x4, scoped, tag = 'scoped memory for tpu_custom_call.1']
    #allocation4 [shape = 's32[1]{0}', space=sflag, size = 0x4, scoped, tag = 'scoped memory for tpu_custom_call.1']
    #allocation5 [shape = 'u8[512]{0}', space=vmem, size = 0x400, scoped, tag = 'input window, operand 1, single buffered']
    #allocation6 [shape = 's32[1]{0}', space=sflag, size = 0x4, scoped, tag = 'scoped memory for tpu_custom_call.1']
    #allocation7 [shape = 'u8[5120]{0}', space=vmem, size = 0x1400, scoped, tag = 'output window, operand 0, single buffered']
    %8 = vsyncpa [#allocation3], 0
    %9 = vsyncpa [#allocation6], 0
    %10 = vsyncpa [#allocation4], 0
    // Predicated region
    $region2: #{tpu_custom_call.1} parent=1 // pred_check
      _
    $region3: #{tpu_custom_call.1} parent=1 // pred_check_branch
      %12 = sbr.rel (0) target = $region5
    $region4: #{tpu_custom_call.1} parent=1 // pred_region
      %14 = vsyncadd [#allocation3], 0
      %s16 = sshll.u32 %s0, 4
      %s17 = int_to_ptr.hbm [resolvable:$true] %s16
      %s18 = sshll.u32 [#allocation2], 4
      %s19 = int_to_ptr.vmem [resolvable:$true] %s18
      %21 = dma.hbm_to_vmem [thread:$0]  %s17, 16, %s19, [#allocation3]
    $region5: #{tpu_custom_call.1} parent=1 // pred_fallthru
      _
    // Predicated region
    $region6: #{tpu_custom_call.1} parent=1 // pred_check
      _
    $region7: #{tpu_custom_call.1} parent=1 // pred_check_branch
      %23 = sbr.rel (0) target = $region9
    $region8: #{tpu_custom_call.1} parent=1 // pred_region
      %25 = vsyncadd [#allocation6], 0
      %s27 = sshll.u32 %s1, 4
      %s28 = int_to_ptr.hbm [resolvable:$true] %s27
      %s29 = sshll.u32 [#allocation5], 4
      %s30 = int_to_ptr.vmem [resolvable:$true] %s29
      %32 = dma.hbm_to_vmem [thread:$0]  %s28, 16, %s30, [#allocation6]
    $region9: #{tpu_custom_call.1} parent=1 // pred_fallthru
      _
    // Predicated region
    $region10: #{tpu_custom_call.1} parent=1 // pred_check
      _
    $region11: #{tpu_custom_call.1} parent=1 // pred_check_branch
      %34 = sbr.rel (0) target = $region13
    $region12: #{tpu_custom_call.1} parent=1 // pred_region
      _
    $region13: #{tpu_custom_call.1} parent=1 // pred_fallthru
      _
    // Predicated region
    $region14: #{tpu_custom_call.1} parent=1 // pred_check
      _
    $region15: #{tpu_custom_call.1} parent=1 // pred_check_branch
      %36 = sbr.rel (0) target = $region17
    $region16: #{tpu_custom_call.1} parent=1 // pred_region
      %38 = dma.done [#allocation3], 16
    $region17: #{tpu_custom_call.1} parent=1 // pred_fallthru
      _
    // Predicated region
    $region18: #{tpu_custom_call.1} parent=1 // pred_check
      _
    $region19: #{tpu_custom_call.1} parent=1 // pred_check_branch
      %40 = sbr.rel (0) target = $region21
    $region20: #{tpu_custom_call.1} parent=1 // pred_region
      %42 = dma.done [#allocation6], 16
    $region21: #{tpu_custom_call.1} parent=1 // pred_fallthru
      _
    %v43 = vld [vmem:[#allocation2] sm:$0x1]
    %v44 = vunpack.c.l.b16 %v43
    %v45 = vcvt.s32.f32 %v44
    %v46 = vsub.f32 %v45, 1985.0
    %v47 = vrcp.pop 55.0
    %v48 = vmul.f32 55.0, %v47
    %v49 = vsub.f32 1.0, %v48
    %v50 = vmul.f32 %v47, %v49
    %v51 = vadd.f32 %v47, %v50
    %vm52 = vweird.f32 %v47
    %v53 = vsel %vm52, %v47, %v51
    %v54 = vmul.f32 %v46, %v53
    %vm55 = vcmask 58368
    %56 = vst.msk [vmem:[#allocation7] sm:$0x3] %vm55, %v54
    %v57 = vld [vmem:[#allocation5] sm:$0x1]
    %v58 = vunpack.c.l.b16 %v57
    %v59 = vcvt.s32.f32 %v58
    %v60 = vsub.f32 %v59, 1.0
    %v61 = vmul.f32 %v60, 6.2831855
    %v62 = vrcp.pop 12.0
    %v63 = vmul.f32 12.0, %v62
    %v64 = vsub.f32 1.0, %v63
    %v65 = vmul.f32 %v62, %v64
    %v66 = vadd.f32 %v62, %v65
    %vm67 = vweird.f32 %v62
    %v68 = vsel %vm67, %v62, %v66
    %v69 = vmul.f32 %v61, %v68
    %v70 = vand.u32 2147483647, %v69
    %vm71 = vcmp.le.f32.partialorder %v70, 0.7853982
    %vm72 = vcmp.lt.s32.totalorder %v69, 0
    %v73 = vand.u32 %v69, 2139095040
    %v74 = vshrl.u32 %v73, 23
    %v75 = vsub.s32 %v74, 127
    %v76 = vand.u32 2147483647, %v69
    %v77 = vand.u32 %v76, 8388607
    %v78 = vor.u32 %v77, 8388608
    %v79 = vsub.s32 0, %v78
    %v80 = vadd.s32 %v75, 1
    %vm81 = vcmp.gt.s32.totalorder %v80, 0
    %v82 = vsel %vm81, %v80, 0
    %v83 = vshrl.u32 %v82, 5
    %v84 = vand.u32 %v82, 31
    %v85 = vsub.s32 32, %v84
    %v86 = vshrl.u32 683565275, %v85
    %v87 = vshll.u32 683565275, %v84
    %v88 = vshrl.u32 2475754826, %v85
    %v89 = vor.u32 %v87, %v88
    %v90 = vshll.u32 2475754826, %v84
    %v91 = vshrl.u32 2131351028, %v85
    %v92 = vor.u32 %v90, %v91
    %v93 = vshll.u32 2131351028, %v84
    %v94 = vshrl.u32 2102212464, %v85
    %v95 = vor.u32 %v93, %v94
    %v96 = vshll.u32 2102212464, %v84
    %v97 = vshrl.u32 920167782, %v85
    %v98 = vor.u32 %v96, %v97
    %v99 = vshll.u32 920167782, %v84
    %v100 = vshrl.u32 1326507024, %v85
    %v101 = vor.u32 %v99, %v100
    %vm102 = vcmp.lt.s32.totalorder %v83, 1
    %vm103 = vcmp.lt.s32.totalorder %v83, 2
    %vm104 = vcmp.lt.s32.totalorder %v83, 3
    %vm105 = vcmp.lt.s32.totalorder %v83, 4
    %v106 = vsel %vm102, %v86, %v89
    %v107 = vsel %vm105, %v95, 2102212464
    %v108 = vsel %vm104, %v92, %v107
    %v109 = vsel %vm103, %v106, %v108
    %v110 = vsel %vm102, %v89, %v92
    %v111 = vsel %vm105, %v98, 920167782
    %v112 = vsel %vm104, %v95, %v111
    %v113 = vsel %vm103, %v110, %v112
    %v114 = vsel %vm102, %v92, %v95
    %v115 = vsel %vm105, %v101, 1326507024
    %v116 = vsel %vm104, %v98, %v115
    %v117 = vsel %vm103, %v114, %v116
    %v118 = vshll.u32 %v78, 8
    %v119 = vand.u32 %v118, 65535
    %v120 = vshrl.u32 %v118, 16
    %v121 = vand.u32 %v117, 65535
    %v122 = vshrl.u32 %v117, 16
    %v123 = vmul.u32 %v119, %v121
    %v124 = vmul.u32 %v119, %v122
    %v125 = vmul.u32 %v120, %v121
    %v126 = vmul.u32 %v120, %v122
    %v127 = vshll.u32 %v124, 16
    %v128 = vshrl.u32 %v124, 16
    %v129 = vshll.u32 %v125, 16
    %v130 = vshrl.u32 %v125, 16
    %vm131 = vc.u32 %v123, %v127
    %v132 = vsel %vm131, 1, 0
    %v133 = vadd.s32 %v123, %v127
    %v134 = vadd.s32 %v126, %v132
    %vm135 = vc.u32 %v133, %v129
    %v136 = vsel %vm135, 1, 0
    %v137 = vadd.s32 %v133, %v129
    %v138 = vadd.s32 %v134, %v136
    %v139 = vadd.s32 %v138, %v128
    %v140 = vadd.s32 %v139, %v130
    %v141 = vand.u32 %v118, 65535
    %v142 = vshrl.u32 %v118, 16
    %v143 = vand.u32 %v113, 65535
    %v144 = vshrl.u32 %v113, 16
    %v145 = vmul.u32 %v141, %v143
    %v146 = vmul.u32 %v141, %v144
    %v147 = vmul.u32 %v142, %v143
    %v148 = vmul.u32 %v142, %v144
    %v149 = vshll.u32 %v146, 16
    %v150 = vshrl.u32 %v146, 16
    %v151 = vshll.u32 %v147, 16
    %v152 = vshrl.u32 %v147, 16
    %vm153 = vc.u32 %v145, %v149
    %v154 = vsel %vm153, 1, 0
    %v155 = vadd.s32 %v145, %v149
    %v156 = vadd.s32 %v148, %v154
    %vm157 = vc.u32 %v155, %v151
    %v158 = vsel %vm157, 1, 0
    %v159 = vadd.s32 %v155, %v151
    %v160 = vadd.s32 %v156, %v158
    %v161 = vadd.s32 %v160, %v150
    %v162 = vadd.s32 %v161, %v152
    %v163 = vmul.u32 %v118, %v109
    %v164 = vadd.s32 %v140, %v159
    %vm165 = vc.u32 %v140, %v159
    %v166 = vadd.s32 %v162, 1
    %v167 = vsel %vm165, %v166, %v162
    %v168 = vadd.s32 %v163, %v167
    %v169 = vadd.s32 %v168, 536870912
    %v170 = vshrl.u32 %v169, 30
    %v171 = vshll.u32 %v170, 30
    %v172 = vsub.s32 %v168, %v171
    %vm173 = vcmp.lt.s32.totalorder %v172, 0
    %v174 = vsub.s32 0, %v172
    %v175 = vsel %vm173, %v174, %v172
    %v176 = vclz %v175
    %v177 = vsub.s32 %v176, 2
    %vm178 = vcmp.gt.s32.totalorder 0, %v177
    %v179 = vsel %vm178, 0, %v177
    %v180 = vsub.s32 32, %v179
    %v181 = vshll.u32 %v172, %v179
    %v182 = vshrl.u32 %v164, %v180
    %v183 = vor.u32 %v181, %v182
    %v184 = vsub.s32 4294967266, %v179
    %v185 = vadd.s32 %v184, 127
    %v186 = vshll.u32 %v185, 23
    %v187 = vor.u32 4788187, %v186
    %v188 = vand.u32 2147483647, %v187
    %v190 = vcvt.s32.f32 %v183
    %v191 = vmul.f32 %v190, %v188
    %v192 = vxor.u32 %v191, 2147483648
    %v193 = vsel %vm72, %v192, %v191
    %v194 = vsub.s32 4, %v170
    %v195 = vsel %vm72, %v194, %v170
    %v196 = vsel %vm71, %v69, %v193
    %v197 = vsel %vm71, 0, %v195
    %v198 = vmul.f32 %v196, %v196
    %v199 = vmul.f32 %v198, -0.001358992
    %v200 = vadd.f32 %v199, 0.041655596
    %v201 = vmul.f32 %v198, %v200
    %v202 = vadd.f32 %v201, -0.4999988
    %v203 = vmul.f32 %v198, %v202
    %v204 = vadd.f32 1.0, %v203
    %v205 = vmul.f32 %v196, %v196
    %v206 = vmul.f32 %v205, -0.00019511016
    %v207 = vadd.f32 %v206, 0.008332121
    %v208 = vmul.f32 %v205, %v207
    %v209 = vadd.f32 %v208, -0.16666654
    %v210 = vmul.f32 %v205, %v209
    %v211 = vadd.f32 %v210, 1.0
    %v212 = vmul.f32 %v211, %v196
    %vm213 = vweird.f32 %v69
    %v214 = vadd.s32 %v197, 3
    %v215 = vand.u32 %v214, 3
    %vm216 = vcmp.lt.s32.totalorder %v215, 2
    %vm217 = vcmp.eq.s32.totalorder %v215, 0
    %v218 = vxor.u32 %v212, 2147483648
    %v219 = vsel %vm217, %v204, %v218
    %vm220 = vcmp.eq.s32.totalorder %v215, 2
    %v221 = vxor.u32 %v204, 2147483648
    %v222 = vsel %vm220, %v221, %v212
    %v223 = vsel %vm216, %v219, %v222
    %v224 = vsel %vm213, nan, %v223
    %s225 = scalar_lea.vmem [#allocation7], 2
    %226 = vst.msk [vmem:[%s225] sm:$0x3] %vm55, %v224
    %v227 = vand.u32 2147483647, %v69
    %vm228 = vcmp.le.f32.partialorder %v227, 0.7853982
    %vm229 = vcmp.lt.s32.totalorder %v69, 0
    %v230 = vand.u32 %v69, 2139095040
    %v231 = vshrl.u32 %v230, 23
    %v232 = vsub.s32 %v231, 127
    %v233 = vand.u32 2147483647, %v69
    %v234 = vand.u32 %v233, 8388607
    %v235 = vor.u32 %v234, 8388608
    %v236 = vsub.s32 0, %v235
    %v237 = vadd.s32 %v232, 1
    %vm238 = vcmp.gt.s32.totalorder %v237, 0
    %v239 = vsel %vm238, %v237, 0
    %v240 = vshrl.u32 %v239, 5
    %v241 = vand.u32 %v239, 31
    %v242 = vsub.s32 32, %v241
    %v243 = vshrl.u32 683565275, %v242
    %v244 = vshll.u32 683565275, %v241
    %v245 = vshrl.u32 2475754826, %v242
    %v246 = vor.u32 %v244, %v245
    %v247 = vshll.u32 2475754826, %v241
    %v248 = vshrl.u32 2131351028, %v242
    %v249 = vor.u32 %v247, %v248
    %v250 = vshll.u32 2131351028, %v241
    %v251 = vshrl.u32 2102212464, %v242
    %v252 = vor.u32 %v250, %v251
    %v253 = vshll.u32 2102212464, %v241
    %v254 = vshrl.u32 920167782, %v242
    %v255 = vor.u32 %v253, %v254
    %v256 = vshll.u32 920167782, %v241
    %v257 = vshrl.u32 1326507024, %v242
    %v258 = vor.u32 %v256, %v257
    %vm259 = vcmp.lt.s32.totalorder %v240, 1
    %vm260 = vcmp.lt.s32.totalorder %v240, 2
    %vm261 = vcmp.lt.s32.totalorder %v240, 3
    %vm262 = vcmp.lt.s32.totalorder %v240, 4
    %v263 = vsel %vm259, %v243, %v246
    %v264 = vsel %vm262, %v252, 2102212464
    %v265 = vsel %vm261, %v249, %v264
    %v266 = vsel %vm260, %v263, %v265
    %v267 = vsel %vm259, %v246, %v249
    %v268 = vsel %vm262, %v255, 920167782
    %v269 = vsel %vm261, %v252, %v268
    %v270 = vsel %vm260, %v267, %v269
    %v271 = vsel %vm259, %v249, %v252
    %v272 = vsel %vm262, %v258, 1326507024
    %v273 = vsel %vm261, %v255, %v272
    %v274 = vsel %vm260, %v271, %v273
    %v275 = vshll.u32 %v235, 8
    %v276 = vand.u32 %v275, 65535
    %v277 = vshrl.u32 %v275, 16
    %v278 = vand.u32 %v274, 65535
    %v279 = vshrl.u32 %v274, 16
    %v280 = vmul.u32 %v276, %v278
    %v281 = vmul.u32 %v276, %v279
    %v282 = vmul.u32 %v277, %v278
    %v283 = vmul.u32 %v277, %v279
    %v284 = vshll.u32 %v281, 16
    %v285 = vshrl.u32 %v281, 16
    %v286 = vshll.u32 %v282, 16
    %v287 = vshrl.u32 %v282, 16
    %vm288 = vc.u32 %v280, %v284
    %v289 = vsel %vm288, 1, 0
    %v290 = vadd.s32 %v280, %v284
    %v291 = vadd.s32 %v283, %v289
    %vm292 = vc.u32 %v290, %v286
    %v293 = vsel %vm292, 1, 0
    %v294 = vadd.s32 %v290, %v286
    %v295 = vadd.s32 %v291, %v293
    %v296 = vadd.s32 %v295, %v285
    %v297 = vadd.s32 %v296, %v287
    %v298 = vand.u32 %v275, 65535
    %v299 = vshrl.u32 %v275, 16
    %v300 = vand.u32 %v270, 65535
    %v301 = vshrl.u32 %v270, 16
    %v302 = vmul.u32 %v298, %v300
    %v303 = vmul.u32 %v298, %v301
    %v304 = vmul.u32 %v299, %v300
    %v305 = vmul.u32 %v299, %v301
    %v306 = vshll.u32 %v303, 16
    %v307 = vshrl.u32 %v303, 16
    %v308 = vshll.u32 %v304, 16
    %v309 = vshrl.u32 %v304, 16
    %vm310 = vc.u32 %v302, %v306
    %v311 = vsel %vm310, 1, 0
    %v312 = vadd.s32 %v302, %v306
    %v313 = vadd.s32 %v305, %v311
    %vm314 = vc.u32 %v312, %v308
    %v315 = vsel %vm314, 1, 0
    %v316 = vadd.s32 %v312, %v308
    %v317 = vadd.s32 %v313, %v315
    %v318 = vadd.s32 %v317, %v307
    %v319 = vadd.s32 %v318, %v309
    %v320 = vmul.u32 %v275, %v266
    %v321 = vadd.s32 %v297, %v316
    %vm322 = vc.u32 %v297, %v316
    %v323 = vadd.s32 %v319, 1
    %v324 = vsel %vm322, %v323, %v319
    %v325 = vadd.s32 %v320, %v324
    %v326 = vadd.s32 %v325, 536870912
    %v327 = vshrl.u32 %v326, 30
    %v328 = vshll.u32 %v327, 30
    %v329 = vsub.s32 %v325, %v328
    %vm330 = vcmp.lt.s32.totalorder %v329, 0
    %v331 = vsub.s32 0, %v329
    %v332 = vsel %vm330, %v331, %v329
    %v333 = vclz %v332
    %v334 = vsub.s32 %v333, 2
    %vm335 = vcmp.gt.s32.totalorder 0, %v334
    %v336 = vsel %vm335, 0, %v334
    %v337 = vsub.s32 32, %v336
    %v338 = vshll.u32 %v329, %v336
    %v339 = vshrl.u32 %v321, %v337
    %v340 = vor.u32 %v338, %v339
    %v341 = vsub.s32 4294967266, %v336
    %v342 = vadd.s32 %v341, 127
    %v343 = vshll.u32 %v342, 23
    %v344 = vor.u32 4788187, %v343
    %v345 = vand.u32 2147483647, %v344
    %v347 = vcvt.s32.f32 %v340
    %v348 = vmul.f32 %v347, %v345
    %v349 = vxor.u32 %v348, 2147483648
    %v350 = vsel %vm229, %v349, %v348
    %v351 = vsub.s32 4, %v327
    %v352 = vsel %vm229, %v351, %v327
    %v353 = vsel %vm228, %v69, %v350
    %v354 = vsel %vm228, 0, %v352
    %v355 = vmul.f32 %v353, %v353
    %v356 = vmul.f32 %v355, -0.001358992
    %v357 = vadd.f32 %v356, 0.041655596
    %v358 = vmul.f32 %v355, %v357
    %v359 = vadd.f32 %v358, -0.4999988
    %v360 = vmul.f32 %v355, %v359
    %v361 = vadd.f32 1.0, %v360
    %v362 = vmul.f32 %v353, %v353
    %v363 = vmul.f32 %v362, -0.00019511016
    %v364 = vadd.f32 %v363, 0.008332121
    %v365 = vmul.f32 %v362, %v364
    %v366 = vadd.f32 %v365, -0.16666654
    %v367 = vmul.f32 %v362, %v366
    %v368 = vadd.f32 %v367, 1.0
    %v369 = vmul.f32 %v368, %v353
    %vm370 = vweird.f32 %v69
    %v371 = vand.u32 %v354, 3
    %vm372 = vcmp.lt.s32.totalorder %v371, 2
    %vm373 = vcmp.eq.s32.totalorder %v371, 0
    %v374 = vxor.u32 %v369, 2147483648
    %v375 = vsel %vm373, %v361, %v374
    %vm376 = vcmp.eq.s32.totalorder %v371, 2
    %v377 = vxor.u32 %v361, 2147483648
    %v378 = vsel %vm376, %v377, %v369
    %v379 = vsel %vm372, %v375, %v378
    %v380 = vsel %vm370, nan, %v379
    %s381 = scalar_lea.vmem [#allocation7], 4
    %382 = vst.msk [vmem:[%s381] sm:$0x3] %vm55, %v380
    %v383 = vld [vmem:[%s2] sm:$0x1]
    %v384 = vunpack.c.l.b16 %v383
    %v385 = vcvt.s32.f32 %v384
    %v386 = vsub.f32 %v385, 1.0
    %v387 = vmul.f32 %v386, 6.2831855
    %v388 = vrcp.pop 31.0
    %v389 = vmul.f32 31.0, %v388
    %v390 = vsub.f32 1.0, %v389
    %v391 = vmul.f32 %v388, %v390
    %v392 = vadd.f32 %v388, %v391
    %vm393 = vweird.f32 %v388
    %v394 = vsel %vm393, %v388, %v392
    %v395 = vmul.f32 %v387, %v394
    %v396 = vand.u32 2147483647, %v395
    %vm397 = vcmp.le.f32.partialorder %v396, 0.7853982
    %vm398 = vcmp.lt.s32.totalorder %v395, 0
    %v399 = vand.u32 %v395, 2139095040
    %v400 = vshrl.u32 %v399, 23
    %v401 = vsub.s32 %v400, 127
    %v402 = vand.u32 2147483647, %v395
    %v403 = vand.u32 %v402, 8388607
    %v404 = vor.u32 %v403, 8388608
    %v405 = vsub.s32 0, %v404
    %v406 = vadd.s32 %v401, 1
    %vm407 = vcmp.gt.s32.totalorder %v406, 0
    %v408 = vsel %vm407, %v406, 0
    %v409 = vshrl.u32 %v408, 5
    %v410 = vand.u32 %v408, 31
    %v411 = vsub.s32 32, %v410
    %v412 = vshrl.u32 683565275, %v411
    %v413 = vshll.u32 683565275, %v410
    %v414 = vshrl.u32 2475754826, %v411
    %v415 = vor.u32 %v413, %v414
    %v416 = vshll.u32 2475754826, %v410
    %v417 = vshrl.u32 2131351028, %v411
    %v418 = vor.u32 %v416, %v417
    %v419 = vshll.u32 2131351028, %v410
    %v420 = vshrl.u32 2102212464, %v411
    %v421 = vor.u32 %v419, %v420
    %v422 = vshll.u32 2102212464, %v410
    %v423 = vshrl.u32 920167782, %v411
    %v424 = vor.u32 %v422, %v423
    %v425 = vshll.u32 920167782, %v410
    %v426 = vshrl.u32 1326507024, %v411
    %v427 = vor.u32 %v425, %v426
    %vm428 = vcmp.lt.s32.totalorder %v409, 1
    %vm429 = vcmp.lt.s32.totalorder %v409, 2
    %vm430 = vcmp.lt.s32.totalorder %v409, 3
    %vm431 = vcmp.lt.s32.totalorder %v409, 4
    %v432 = vsel %vm428, %v412, %v415
    %v433 = vsel %vm431, %v421, 2102212464
    %v434 = vsel %vm430, %v418, %v433
    %v435 = vsel %vm429, %v432, %v434
    %v436 = vsel %vm428, %v415, %v418
    %v437 = vsel %vm431, %v424, 920167782
    %v438 = vsel %vm430, %v421, %v437
    %v439 = vsel %vm429, %v436, %v438
    %v440 = vsel %vm428, %v418, %v421
    %v441 = vsel %vm431, %v427, 1326507024
    %v442 = vsel %vm430, %v424, %v441
    %v443 = vsel %vm429, %v440, %v442
    %v444 = vshll.u32 %v404, 8
    %v445 = vand.u32 %v444, 65535
    %v446 = vshrl.u32 %v444, 16
    %v447 = vand.u32 %v443, 65535
    %v448 = vshrl.u32 %v443, 16
    %v449 = vmul.u32 %v445, %v447
    %v450 = vmul.u32 %v445, %v448
    %v451 = vmul.u32 %v446, %v447
    %v452 = vmul.u32 %v446, %v448
    %v453 = vshll.u32 %v450, 16
    %v454 = vshrl.u32 %v450, 16
    %v455 = vshll.u32 %v451, 16
    %v456 = vshrl.u32 %v451, 16
    %vm457 = vc.u32 %v449, %v453
    %v458 = vsel %vm457, 1, 0
    %v459 = vadd.s32 %v449, %v453
    %v460 = vadd.s32 %v452, %v458
    %vm461 = vc.u32 %v459, %v455
    %v462 = vsel %vm461, 1, 0
    %v463 = vadd.s32 %v459, %v455
    %v464 = vadd.s32 %v460, %v462
    %v465 = vadd.s32 %v464, %v454
    %v466 = vadd.s32 %v465, %v456
    %v467 = vand.u32 %v444, 65535
    %v468 = vshrl.u32 %v444, 16
    %v469 = vand.u32 %v439, 65535
    %v470 = vshrl.u32 %v439, 16
    %v471 = vmul.u32 %v467, %v469
    %v472 = vmul.u32 %v467, %v470
    %v473 = vmul.u32 %v468, %v469
    %v474 = vmul.u32 %v468, %v470
    %v475 = vshll.u32 %v472, 16
    %v476 = vshrl.u32 %v472, 16
    %v477 = vshll.u32 %v473, 16
    %v478 = vshrl.u32 %v473, 16
    %vm479 = vc.u32 %v471, %v475
    %v480 = vsel %vm479, 1, 0
    %v481 = vadd.s32 %v471, %v475
    %v482 = vadd.s32 %v474, %v480
    %vm483 = vc.u32 %v481, %v477
    %v484 = vsel %vm483, 1, 0
    %v485 = vadd.s32 %v481, %v477
    %v486 = vadd.s32 %v482, %v484
    %v487 = vadd.s32 %v486, %v476
    %v488 = vadd.s32 %v487, %v478
    %v489 = vmul.u32 %v444, %v435
    %v490 = vadd.s32 %v466, %v485
    %vm491 = vc.u32 %v466, %v485
    %v492 = vadd.s32 %v488, 1
    %v493 = vsel %vm491, %v492, %v488
    %v494 = vadd.s32 %v489, %v493
    %v495 = vadd.s32 %v494, 536870912
    %v496 = vshrl.u32 %v495, 30
    %v497 = vshll.u32 %v496, 30
    %v498 = vsub.s32 %v494, %v497
    %vm499 = vcmp.lt.s32.totalorder %v498, 0
    %v500 = vsub.s32 0, %v498
    %v501 = vsel %vm499, %v500, %v498
    %v502 = vclz %v501
    %v503 = vsub.s32 %v502, 2
    %vm504 = vcmp.gt.s32.totalorder 0, %v503
    %v505 = vsel %vm504, 0, %v503
    %v506 = vsub.s32 32, %v505
    %v507 = vshll.u32 %v498, %v505
    %v508 = vshrl.u32 %v490, %v506
    %v509 = vor.u32 %v507, %v508
    %v510 = vsub.s32 4294967266, %v505
    %v511 = vadd.s32 %v510, 127
    %v512 = vshll.u32 %v511, 23
    %v513 = vor.u32 4788187, %v512
    %v514 = vand.u32 2147483647, %v513
    %v516 = vcvt.s32.f32 %v509
    %v517 = vmul.f32 %v516, %v514
    %v518 = vxor.u32 %v517, 2147483648
    %v519 = vsel %vm398, %v518, %v517
    %v520 = vsub.s32 4, %v496
    %v521 = vsel %vm398, %v520, %v496
    %v522 = vsel %vm397, %v395, %v519
    %v523 = vsel %vm397, 0, %v521
    %v524 = vmul.f32 %v522, %v522
    %v525 = vmul.f32 %v524, -0.001358992
    %v526 = vadd.f32 %v525, 0.041655596
    %v527 = vmul.f32 %v524, %v526
    %v528 = vadd.f32 %v527, -0.4999988
    %v529 = vmul.f32 %v524, %v528
    %v530 = vadd.f32 1.0, %v529
    %v531 = vmul.f32 %v522, %v522
    %v532 = vmul.f32 %v531, -0.00019511016
    %v533 = vadd.f32 %v532, 0.008332121
    %v534 = vmul.f32 %v531, %v533
    %v535 = vadd.f32 %v534, -0.16666654
    %v536 = vmul.f32 %v531, %v535
    %v537 = vadd.f32 %v536, 1.0
    %v538 = vmul.f32 %v537, %v522
    %vm539 = vweird.f32 %v395
    %v540 = vadd.s32 %v523, 3
    %v541 = vand.u32 %v540, 3
    %vm542 = vcmp.lt.s32.totalorder %v541, 2
    %vm543 = vcmp.eq.s32.totalorder %v541, 0
    %v544 = vxor.u32 %v538, 2147483648
    %v545 = vsel %vm543, %v530, %v544
    %vm546 = vcmp.eq.s32.totalorder %v541, 2
    %v547 = vxor.u32 %v530, 2147483648
    %v548 = vsel %vm546, %v547, %v538
    %v549 = vsel %vm542, %v545, %v548
    %v550 = vsel %vm539, nan, %v549
    %s551 = scalar_lea.vmem [#allocation7], 6
    %552 = vst.msk [vmem:[%s551] sm:$0x3] %vm55, %v550
    %v553 = vand.u32 2147483647, %v395
    %vm554 = vcmp.le.f32.partialorder %v553, 0.7853982
    %vm555 = vcmp.lt.s32.totalorder %v395, 0
    %v556 = vand.u32 %v395, 2139095040
    %v557 = vshrl.u32 %v556, 23
    %v558 = vsub.s32 %v557, 127
    %v559 = vand.u32 2147483647, %v395
    %v560 = vand.u32 %v559, 8388607
    %v561 = vor.u32 %v560, 8388608
    %v562 = vsub.s32 0, %v561
    %v563 = vadd.s32 %v558, 1
    %vm564 = vcmp.gt.s32.totalorder %v563, 0
    %v565 = vsel %vm564, %v563, 0
    %v566 = vshrl.u32 %v565, 5
    %v567 = vand.u32 %v565, 31
    %v568 = vsub.s32 32, %v567
    %v569 = vshrl.u32 683565275, %v568
    %v570 = vshll.u32 683565275, %v567
    %v571 = vshrl.u32 2475754826, %v568
    %v572 = vor.u32 %v570, %v571
    %v573 = vshll.u32 2475754826, %v567
    %v574 = vshrl.u32 2131351028, %v568
    %v575 = vor.u32 %v573, %v574
    %v576 = vshll.u32 2131351028, %v567
    %v577 = vshrl.u32 2102212464, %v568
    %v578 = vor.u32 %v576, %v577
    %v579 = vshll.u32 2102212464, %v567
    %v580 = vshrl.u32 920167782, %v568
    %v581 = vor.u32 %v579, %v580
    %v582 = vshll.u32 920167782, %v567
    %v583 = vshrl.u32 1326507024, %v568
    %v584 = vor.u32 %v582, %v583
    %vm585 = vcmp.lt.s32.totalorder %v566, 1
    %vm586 = vcmp.lt.s32.totalorder %v566, 2
    %vm587 = vcmp.lt.s32.totalorder %v566, 3
    %vm588 = vcmp.lt.s32.totalorder %v566, 4
    %v589 = vsel %vm585, %v569, %v572
    %v590 = vsel %vm588, %v578, 2102212464
    %v591 = vsel %vm587, %v575, %v590
    %v592 = vsel %vm586, %v589, %v591
    %v593 = vsel %vm585, %v572, %v575
    %v594 = vsel %vm588, %v581, 920167782
    %v595 = vsel %vm587, %v578, %v594
    %v596 = vsel %vm586, %v593, %v595
    %v597 = vsel %vm585, %v575, %v578
    %v598 = vsel %vm588, %v584, 1326507024
    %v599 = vsel %vm587, %v581, %v598
    %v600 = vsel %vm586, %v597, %v599
    %v601 = vshll.u32 %v561, 8
    %v602 = vand.u32 %v601, 65535
    %v603 = vshrl.u32 %v601, 16
    %v604 = vand.u32 %v600, 65535
    %v605 = vshrl.u32 %v600, 16
    %v606 = vmul.u32 %v602, %v604
    %v607 = vmul.u32 %v602, %v605
    %v608 = vmul.u32 %v603, %v604
    %v609 = vmul.u32 %v603, %v605
    %v610 = vshll.u32 %v607, 16
    %v611 = vshrl.u32 %v607, 16
    %v612 = vshll.u32 %v608, 16
    %v613 = vshrl.u32 %v608, 16
    %vm614 = vc.u32 %v606, %v610
    %v615 = vsel %vm614, 1, 0
    %v616 = vadd.s32 %v606, %v610
    %v617 = vadd.s32 %v609, %v615
    %vm618 = vc.u32 %v616, %v612
    %v619 = vsel %vm618, 1, 0
    %v620 = vadd.s32 %v616, %v612
    %v621 = vadd.s32 %v617, %v619
    %v622 = vadd.s32 %v621, %v611
    %v623 = vadd.s32 %v622, %v613
    %v624 = vand.u32 %v601, 65535
    %v625 = vshrl.u32 %v601, 16
    %v626 = vand.u32 %v596, 65535
    %v627 = vshrl.u32 %v596, 16
    %v628 = vmul.u32 %v624, %v626
    %v629 = vmul.u32 %v624, %v627
    %v630 = vmul.u32 %v625, %v626
    %v631 = vmul.u32 %v625, %v627
    %v632 = vshll.u32 %v629, 16
    %v633 = vshrl.u32 %v629, 16
    %v634 = vshll.u32 %v630, 16
    %v635 = vshrl.u32 %v630, 16
    %vm636 = vc.u32 %v628, %v632
    %v637 = vsel %vm636, 1, 0
    %v638 = vadd.s32 %v628, %v632
    %v639 = vadd.s32 %v631, %v637
    %vm640 = vc.u32 %v638, %v634
    %v641 = vsel %vm640, 1, 0
    %v642 = vadd.s32 %v638, %v634
    %v643 = vadd.s32 %v639, %v641
    %v644 = vadd.s32 %v643, %v633
    %v645 = vadd.s32 %v644, %v635
    %v646 = vmul.u32 %v601, %v592
    %v647 = vadd.s32 %v623, %v642
    %vm648 = vc.u32 %v623, %v642
    %v649 = vadd.s32 %v645, 1
    %v650 = vsel %vm648, %v649, %v645
    %v651 = vadd.s32 %v646, %v650
    %v652 = vadd.s32 %v651, 536870912
    %v653 = vshrl.u32 %v652, 30
    %v654 = vshll.u32 %v653, 30
    %v655 = vsub.s32 %v651, %v654
    %vm656 = vcmp.lt.s32.totalorder %v655, 0
    %v657 = vsub.s32 0, %v655
    %v658 = vsel %vm656, %v657, %v655
    %v659 = vclz %v658
    %v660 = vsub.s32 %v659, 2
    %vm661 = vcmp.gt.s32.totalorder 0, %v660
    %v662 = vsel %vm661, 0, %v660
    %v663 = vsub.s32 32, %v662
    %v664 = vshll.u32 %v655, %v662
    %v665 = vshrl.u32 %v647, %v663
    %v666 = vor.u32 %v664, %v665
    %v667 = vsub.s32 4294967266, %v662
    %v668 = vadd.s32 %v667, 127
    %v669 = vshll.u32 %v668, 23
    %v670 = vor.u32 4788187, %v669
    %v671 = vand.u32 2147483647, %v670
    %v673 = vcvt.s32.f32 %v666
    %v674 = vmul.f32 %v673, %v671
    %v675 = vxor.u32 %v674, 2147483648
    %v676 = vsel %vm555, %v675, %v674
    %v677 = vsub.s32 4, %v653
    %v678 = vsel %vm555, %v677, %v653
    %v679 = vsel %vm554, %v395, %v676
    %v680 = vsel %vm554, 0, %v678
    %v681 = vmul.f32 %v679, %v679
    %v682 = vmul.f32 %v681, -0.001358992
    %v683 = vadd.f32 %v682, 0.041655596
    %v684 = vmul.f32 %v681, %v683
    %v685 = vadd.f32 %v684, -0.4999988
    %v686 = vmul.f32 %v681, %v685
    %v687 = vadd.f32 1.0, %v686
    %v688 = vmul.f32 %v679, %v679
    %v689 = vmul.f32 %v688, -0.00019511016
    %v690 = vadd.f32 %v689, 0.008332121
    %v691 = vmul.f32 %v688, %v690
    %v692 = vadd.f32 %v691, -0.16666654
    %v693 = vmul.f32 %v688, %v692
    %v694 = vadd.f32 %v693, 1.0
    %v695 = vmul.f32 %v694, %v679
    %vm696 = vweird.f32 %v395
    %v697 = vand.u32 %v680, 3
    %vm698 = vcmp.lt.s32.totalorder %v697, 2
    %vm699 = vcmp.eq.s32.totalorder %v697, 0
    %v700 = vxor.u32 %v695, 2147483648
    %v701 = vsel %vm699, %v687, %v700
    %vm702 = vcmp.eq.s32.totalorder %v697, 2
    %v703 = vxor.u32 %v687, 2147483648
    %v704 = vsel %vm702, %v703, %v695
    %v705 = vsel %vm698, %v701, %v704
    %v706 = vsel %vm696, nan, %v705
    %s707 = scalar_lea.vmem [#allocation7], 8
    %708 = vst.msk [vmem:[%s707] sm:$0x3] %vm55, %v706
    // Predicated region
    $region22: #{tpu_custom_call.1} parent=1 // pred_check
      _
    $region23: #{tpu_custom_call.1} parent=1 // pred_check_branch
      %710 = sbr.rel (0) target = $region25
    $region24: #{tpu_custom_call.1} parent=1 // pred_region
      %712 = vsyncadd [#allocation4], 0
      %s713 = sshll.u32 [#allocation7], 4
      %s714 = int_to_ptr.vmem [resolvable:$true] %s713
      %s715 = sshll.u32 %s3, 4
      %s716 = int_to_ptr.hbm [resolvable:$true] %s715
      %721 = dma.vmem_to_hbm [thread:$0]  %s714, 160, %s716, [#allocation4], 32, 32, 2
    $region25: #{tpu_custom_call.1} parent=1 // pred_fallthru
      _
    // Predicated region
    $region26: #{tpu_custom_call.1} parent=1 // pred_check
      _
    $region27: #{tpu_custom_call.1} parent=1 // pred_check_branch
      %723 = sbr.rel (0) target = $region29
    $region28: #{tpu_custom_call.1} parent=1 // pred_region
      %725 = dma.done [#allocation4], 160
    $region29: #{tpu_custom_call.1} parent=1 // pred_fallthru
      _
    %726 = vsyncpa [#allocation3], 1
    %727 = vsyncpa [#allocation6], 1
    %728 = vsyncpa [#allocation4], 1

</llo_original>
